<compile_context>
chip_gen: v7x
topology: tpu7x:2x2x1
jax: 0.10.0
libtpu: 0.0.40
codegen_flags: <defaults>
</compile_context>

<pallas_src>
import functools

import jax
import jax.numpy as jnp
from jax import lax
from jax.experimental import pallas as pl
from jax.experimental.pallas import tpu as pltpu

LN_EPS = 1e-5  # nn.LayerNorm default


def _round_up(a, b):
    return (a + b - 1) // b * b


# ----------------------------- in-kernel helpers -----------------------------
def _layernorm(x, gamma, beta):
    # x: (TM, D) fp32, gamma/beta: (1, D) fp32. Biased variance, like PyTorch.
    mu = jnp.mean(x, axis=-1, keepdims=True)
    xc = x - mu
    var = jnp.mean(xc * xc, axis=-1, keepdims=True)
    inv = lax.rsqrt(var + LN_EPS)
    return xc * inv * gamma + beta


def _erf(x):
    # Abramowitz & Stegun 7.1.26 (|err| <= 1.5e-7).  The 1/(1+p|x|) term is
    # routed to the EUP via pl.reciprocal so the GELU polynomial does not pile
    # onto the VALU slots behind the MLP matmuls.
    a1, a2, a3, a4, a5 = (0.254829592, -0.284496736, 1.421413741,
                          -1.453152027, 1.061405429)
    p = 0.3275911
    ax = jnp.abs(x)
    t = pl.reciprocal(1.0 + p * ax, approx=True)
    poly = ((((a5 * t + a4) * t + a3) * t + a2) * t + a1) * t
    y = 1.0 - poly * jnp.exp(-ax * ax)
    return jnp.where(x < 0, -y, y)


def _gelu_exact(x):
    return 0.5 * x * (1.0 + _erf(x * 0.7071067811865476))


# --------------------------------- kernels -----------------------------------
def ln_qkv_kernel(x_ref, g_ref, b_ref, w_ref, wb_ref, o_ref):
    # x: (TM, D) fp32; w: (D, 3D) bf16 (q columns pre-scaled by 1/sqrt(hd));
    # out: (TM, 3D) bf16 = [q | k | v].  fp32 accumulation, bf16 store.
    xn = _layernorm(x_ref[...], g_ref[...], b_ref[...])
    qkv = (jnp.dot(xn.astype(w_ref.dtype), w_ref[...],
                   preferred_element_type=jnp.float32) + wb_ref[...])
    o_ref[...] = qkv.astype(o_ref.dtype)


def attention_kernel(q_ref, k_ref, v_ref, o_ref, *, heads_per_block, head_dim):
    # One (batch, head-group) per grid step.  q/k/v blocks are (S, GW) bf16
    # column slices of the fused (M, 3D) qkv slab; output is written straight
    # into the (M, D) ctx slab (GW is a multiple of 128 lanes -> dense stores).
    # The 1/sqrt(hd) query scale is already folded into q.
    # TODO(synk): for long sequences, tile the KV axis (online softmax) instead
    # of materializing the full (S, S) score matrix per head.
    for h in range(heads_per_block):
        lo = h * head_dim
        q = q_ref[:, lo:lo + head_dim]                 # (S, hd) bf16
        k = k_ref[:, lo:lo + head_dim]
        v = v_ref[:, lo:lo + head_dim]
        # q @ k^T without an explicit transpose; bf16 MXU inputs, fp32 scores.
        s = lax.dot_general(q, k, (((1,), (1,)), ((), ())),
                            preferred_element_type=jnp.float32)
        m = jnp.max(s, axis=-1, keepdims=True)
        e = jnp.exp(s - m)
        p = e * pl.reciprocal(jnp.sum(e, axis=-1, keepdims=True), approx=True)
        ctx = jnp.dot(p.astype(v.dtype), v, preferred_element_type=jnp.float32)
        o_ref[:, lo:lo + head_dim] = ctx.astype(o_ref.dtype)


def proj_mlp_kernel(ctx_ref, res_ref, wo_ref, bo_ref, g2_ref, be2_ref,
                    w1_ref, b1_ref, w2_ref, b2_ref, o_ref):
    # Fused: y = x + ctx @ Wo + bo ; out = y + W2 @ gelu(W1 @ LN2(y) + b1) + b2
    attn = (jnp.dot(ctx_ref[...], wo_ref[...],
                    preferred_element_type=jnp.float32) + bo_ref[...])
    y = res_ref[...] + attn                            # (TM, D) fp32
    h = _layernorm(y, g2_ref[...], be2_ref[...])
    a = (jnp.dot(h.astype(w1_ref.dtype), w1_ref[...],
                 preferred_element_type=jnp.float32) + b1_ref[...])
    a = _gelu_exact(a)
    m = (jnp.dot(a.astype(w2_ref.dtype), w2_ref[...],
                 preferred_element_type=jnp.float32) + b2_ref[...])
    o_ref[...] = y + m


# --------------------------------- wrapper -----------------------------------
def _vmem_limit(*tensor_bytes):
    # Double-buffered blocks + headroom for compiler scratch, clamped to stay
    # below the smallest physical VMEM across generations (v7x: 64 MiB / TC).
    est = 2 * int(sum(tensor_bytes))
    est = int(est * 1.5) + (4 << 20)
    return int(max(32 << 20, min(est, 60 << 20)))


def transformer_encoder(x, params, *, num_heads, row_tile=512,
                        matmul_dtype=jnp.bfloat16):
    """x: (B, S, D) fp32.  Params mirror the PyTorch module (weights already
    transposed to (in, out) layout, i.e. w_qkv = in_proj_weight.T, etc.)."""
    B, S, D = x.shape
    H = num_heads
    hd = D // H
    M = B * S
    F = params["w1"].shape[1]
    f32 = jnp.float32

    assert S % 8 == 0, "TODO(synk): pad the sequence to a sublane multiple"

    # ---- row tiling: batch*seq folded into one matmul M dimension ----
    if M > row_tile:
        TM = row_tile
    else:
        # Split small M into >=2 grid steps so both v7x TensorCores get work.
        half = _round_up(pl.cdiv(M, 2), 8)
        TM = half if half < M else _round_up(M, 8)
    M_pad = _round_up(M, TM)
    n_row_tiles = M_pad // TM

    x2d = x.reshape(M, D).astype(f32)
    if M_pad != M:
        x2d = jnp.pad(x2d, ((0, M_pad - M), (0, 0)))

    # ---- attention head grouping: column blocks of >=128 lanes ----
    hpg = H
    for cand in range(1, H + 1):
        if H % cand == 0 and (cand * hd) % 128 == 0:
            hpg = cand
            break
    GW = hpg * hd                       # lanes per attention grid step
    ngrp = H // hpg
    assert GW % 128 == 0, "head_dim * heads_per_group must be a lane multiple"

    row = lambda t: t.reshape(1, -1).astype(f32)
    # Fold the 1/sqrt(hd) query scale into the q columns of the fused QKV
    # projection (weights + bias), so the attention kernel never applies it.
    scale = float(hd) ** -0.5
    col_scale = jnp.concatenate(
        [jnp.full((D,), scale, f32), jnp.ones((2 * D,), f32)])
    wq = (params["w_qkv"].astype(f32) * col_scale[None, :]).astype(matmul_dtype)
    bq = (params["b_qkv"].astype(f32) * col_scale).reshape(1, -1)
    wo = params["w_o"].astype(matmul_dtype)          # (D, D)
    w1 = params["w1"].astype(matmul_dtype)           # (D, F)
    w2 = params["w2"].astype(matmul_dtype)           # (F, D)

    # ---- kernel 1: LN1 + fused QKV projection -> bf16 (M_pad, 3D) ----
    k1_vmem = _vmem_limit(TM * D * 4, 2 * D * 4, D * 3 * D * 2, 3 * D * 4,
                          TM * 3 * D * 2)
    qkv = pl.pallas_call(
        ln_qkv_kernel,
        out_shape=jax.ShapeDtypeStruct((M_pad, 3 * D), matmul_dtype),
        grid_spec=pltpu.PrefetchScalarGridSpec(
            num_scalar_prefetch=0,
            grid=(n_row_tiles,),
            in_specs=[
                pl.BlockSpec((TM, D), lambda i: (i, 0)),
                pl.BlockSpec((1, D), lambda i: (0, 0)),
                pl.BlockSpec((1, D), lambda i: (0, 0)),
                pl.BlockSpec((D, 3 * D), lambda i: (0, 0)),
                pl.BlockSpec((1, 3 * D), lambda i: (0, 0)),
            ],
            out_specs=pl.BlockSpec((TM, 3 * D), lambda i: (i, 0)),
        ),
        compiler_params=pltpu.CompilerParams(
            dimension_semantics=("parallel",), vmem_limit_bytes=k1_vmem),
    )(x2d, row(params["ln1_g"]), row(params["ln1_b"]), wq, bq)

    # ---- kernel 2: attention straight off the (M_pad, 3D) qkv slab ----
    # q / k / v are column slices of the same buffer; output is written in the
    # natural (M, D) layout -> no head split / transpose glue in XLA.
    attn_vmem = _vmem_limit(3 * S * GW * 2, S * GW * 2, hpg * S * S * 4)
    ctx = pl.pallas_call(
        functools.partial(attention_kernel, heads_per_block=hpg, head_dim=hd),
        out_shape=jax.ShapeDtypeStruct((M, D), matmul_dtype),
        grid_spec=pltpu.PrefetchScalarGridSpec(
            num_scalar_prefetch=0,
            grid=(B, ngrp),
            in_specs=[
                pl.BlockSpec((S, GW), lambda b, g: (b, g)),              # q
                pl.BlockSpec((S, GW), lambda b, g: (b, ngrp + g)),       # k
                pl.BlockSpec((S, GW), lambda b, g: (b, 2 * ngrp + g)),   # v
            ],
            out_specs=pl.BlockSpec((S, GW), lambda b, g: (b, g)),
        ),
        compiler_params=pltpu.CompilerParams(
            dimension_semantics=("parallel", "parallel"),
            vmem_limit_bytes=attn_vmem),
    )(qkv, qkv, qkv)

    if M_pad != M:
        ctx = jnp.pad(ctx, ((0, M_pad - M), (0, 0)))

    # ---- kernel 3: fused out-proj + residual + LN2 + MLP + residual ----
    # TODO(synk): for very large D/F on v7x, tile the F axis of w1/w2 with a
    # reduction grid dim + fp32 scratch to bound resident weight VMEM.
    k3_vmem = _vmem_limit(TM * D * 2, TM * D * 4, D * D * 2, D * 4, 2 * D * 4,
                          D * F * 2, F * 4, F * D * 2, D * 4, TM * D * 4,
                          TM * F * 4)
    out = pl.pallas_call(
        proj_mlp_kernel,
        out_shape=jax.ShapeDtypeStruct((M_pad, D), f32),
        grid_spec=pltpu.PrefetchScalarGridSpec(
            num_scalar_prefetch=0,
            grid=(n_row_tiles,),
            in_specs=[
                pl.BlockSpec((TM, D), lambda i: (i, 0)),    # ctx (bf16)
                pl.BlockSpec((TM, D), lambda i: (i, 0)),    # residual x (f32)
                pl.BlockSpec((D, D), lambda i: (0, 0)),     # w_o
                pl.BlockSpec((1, D), lambda i: (0, 0)),     # b_o
                pl.BlockSpec((1, D), lambda i: (0, 0)),     # ln2 gamma
                pl.BlockSpec((1, D), lambda i: (0, 0)),     # ln2 beta
                pl.BlockSpec((D, F), lambda i: (0, 0)),     # w1
                pl.BlockSpec((1, F), lambda i: (0, 0)),     # b1
                pl.BlockSpec((F, D), lambda i: (0, 0)),     # w2
                pl.BlockSpec((1, D), lambda i: (0, 0)),     # b2
            ],
            out_specs=pl.BlockSpec((TM, D), lambda i: (i, 0)),
        ),
        compiler_params=pltpu.CompilerParams(
            dimension_semantics=("parallel",), vmem_limit_bytes=k3_vmem),
    )(ctx, x2d, wo, row(params["b_o"]), row(params["ln2_g"]),
      row(params["ln2_b"]), w1, row(params["b1"]), w2, row(params["b2"]))

    if M_pad != M:
        out = out[:M]
    return out.reshape(B, S, D)


# ----------------------------- pure-JAX reference -----------------------------
def _reference(x, p, *, num_heads):
    B, S, D = x.shape
    H = num_heads
    hd = D // H

    def ln(t, g, b):
        mu = jnp.mean(t, axis=-1, keepdims=True)
        var = jnp.mean((t - mu) ** 2, axis=-1, keepdims=True)
        return (t - mu) / jnp.sqrt(var + LN_EPS) * g + b

    xn = ln(x, p["ln1_g"], p["ln1_b"])
    qkv = xn @ p["w_qkv"] + p["b_qkv"]
    q, k, v = jnp.split(qkv, 3, axis=-1)

    def heads(t):
        return t.reshape(B, S, H, hd).transpose(0, 2, 1, 3)

    q, k, v = heads(q), heads(k), heads(v)
    s = jnp.einsum("bhqd,bhkd->bhqk", q, k) * (hd ** -0.5)
    a = jax.nn.softmax(s, axis=-1)
    ctx = jnp.einsum("bhqk,bhkd->bhqd", a, v)
    ctx = ctx.transpose(0, 2, 1, 3).reshape(B, S, D)
    y = x + ctx @ p["w_o"] + p["b_o"]
    yn = ln(y, p["ln2_g"], p["ln2_b"])
    h = jax.nn.gelu(yn @ p["w1"] + p["b1"], approximate=False)
    return y + h @ p["w2"] + p["b2"]


if __name__ == "__main__":
    # Small but TPU-friendly shapes consistent with the module:
    # embedding_dim=128, num_heads=4 (head_dim=32), mlp_size=256, seq=16, B=2.
    B, S, D, H, F = 2, 16, 128, 4, 256

    key = jax.random.PRNGKey(0)
    ks = jax.random.split(key, 13)
    x = jax.random.normal(ks[0], (B, S, D), jnp.float32)
    params = {
        "ln1_g": 1.0 + 0.1 * jax.random.normal(ks[1], (D,), jnp.float32),
        "ln1_b": 0.1 * jax.random.normal(ks[2], (D,), jnp.float32),
        # w_qkv = in_proj_weight.T, b_qkv = in_proj_bias (q|k|v order)
        "w_qkv": 0.05 * jax.random.normal(ks[3], (D, 3 * D), jnp.float32),
        "b_qkv": 0.05 * jax.random.normal(ks[4], (3 * D,), jnp.float32),
        # w_o = out_proj.weight.T, b_o = out_proj.bias
        "w_o": 0.05 * jax.random.normal(ks[5], (D, D), jnp.float32),
        "b_o": 0.05 * jax.random.normal(ks[6], (D,), jnp.float32),
        "ln2_g": 1.0 + 0.1 * jax.random.normal(ks[7], (D,), jnp.float32),
        "ln2_b": 0.1 * jax.random.normal(ks[8], (D,), jnp.float32),
        # mlp[0].weight.T / bias, mlp[2].weight.T / bias
        "w1": 0.05 * jax.random.normal(ks[9], (D, F), jnp.float32),
        "b1": 0.05 * jax.random.normal(ks[10], (F,), jnp.float32),
        "w2": 0.05 * jax.random.normal(ks[11], (F, D), jnp.float32),
        "b2": 0.05 * jax.random.normal(ks[12], (D,), jnp.float32),
    }

    out = transformer_encoder(x, params, num_heads=H)
    out = jax.block_until_ready(out)

    ref = _reference(x, params, num_heads=H)
    assert out.shape == (B, S, D), out.shape
    # bf16 matmul inputs + bf16 qkv/ctx intermediates (fp32 accumulate) vs the
    # fp32 reference -> loosened tolerance.
    assert jnp.allclose(out, ref, atol=5e-2, rtol=5e-2), \
        float(jnp.max(jnp.abs(out - ref)))

    print("KERNEL_OK")
</pallas_src>

<mosaic_0001>
module attributes {stable_mosaic.version = 11 : i64} {
  func.func @ln_qkv_kernel(%arg0: i32, %arg1: memref<16x128xf32, #tpu.memory_space<vmem>>, %arg2: memref<1x128xf32, #tpu.memory_space<vmem>>, %arg3: memref<1x128xf32, #tpu.memory_space<vmem>>, %arg4: memref<128x384xbf16, #tpu.memory_space<vmem>>, %arg5: memref<1x384xf32, #tpu.memory_space<vmem>>, %arg6: memref<16x384xbf16, #tpu.memory_space<vmem>>) attributes {dimension_semantics = [#tpu.dimension_semantics<parallel>], iteration_bounds = array<i64: 2>, scalar_prefetch = 0 : i64, scratch_operands = 0 : i64, tpu.core_type = #tpu.core_type<tc>, window_params = [{transform_indices = @transform_0, window_bounds = array<i64: 16, 128>}, {pipeline_mode = #tpu.pipeline_mode<synchronous>, transform_indices = @transform_1, window_bounds = array<i64: 1, 128>}, {pipeline_mode = #tpu.pipeline_mode<synchronous>, transform_indices = @transform_2, window_bounds = array<i64: 1, 128>}, {pipeline_mode = #tpu.pipeline_mode<synchronous>, transform_indices = @transform_3, window_bounds = array<i64: 128, 384>}, {pipeline_mode = #tpu.pipeline_mode<synchronous>, transform_indices = @transform_4, window_bounds = array<i64: 1, 384>}, {transform_indices = @transform_5, window_bounds = array<i64: 16, 384>}]} {
    %c0 = arith.constant 0 : index
    %c0_0 = arith.constant 0 : index
    %0 = vector.load %arg1[%c0, %c0_0] : memref<16x128xf32, #tpu.memory_space<vmem>>, vector<16x128xf32>
    %c0_1 = arith.constant 0 : index
    %c0_2 = arith.constant 0 : index
    %1 = vector.load %arg2[%c0_1, %c0_2] : memref<1x128xf32, #tpu.memory_space<vmem>>, vector<1x128xf32>
    %c0_3 = arith.constant 0 : index
    %c0_4 = arith.constant 0 : index
    %2 = vector.load %arg3[%c0_3, %c0_4] : memref<1x128xf32, #tpu.memory_space<vmem>>, vector<1x128xf32>
    %cst = arith.constant dense<0.000000e+00> : vector<16xf32>
    %3 = vector.multi_reduction <add>, %0, %cst [1] : vector<16x128xf32> to vector<16xf32>
    %4 = vector.shape_cast %3 : vector<16xf32> to vector<16x1xf32>
    %cst_5 = arith.constant 1.280000e+02 : f32
    %5 = vector.broadcast %cst_5 : f32 to vector<16x1xf32>
    %6 = arith.divf %4, %5 : vector<16x1xf32>
    %7 = vector.broadcast %6 : vector<16x1xf32> to vector<16x128xf32>
    %8 = arith.subf %0, %7 : vector<16x128xf32>
    %9 = arith.mulf %8, %8 : vector<16x128xf32>
    %cst_6 = arith.constant dense<0.000000e+00> : vector<16xf32>
    %10 = vector.multi_reduction <add>, %9, %cst_6 [1] : vector<16x128xf32> to vector<16xf32>
    %11 = vector.shape_cast %10 : vector<16xf32> to vector<16x1xf32>
    %cst_7 = arith.constant 1.280000e+02 : f32
    %12 = vector.broadcast %cst_7 : f32 to vector<16x1xf32>
    %13 = arith.divf %11, %12 : vector<16x1xf32>
    %cst_8 = arith.constant 9.99999974E-6 : f32
    %14 = vector.broadcast %cst_8 : f32 to vector<16x1xf32>
    %15 = arith.addf %13, %14 : vector<16x1xf32>
    %16 = math.rsqrt %15 : vector<16x1xf32>
    %17 = vector.broadcast %16 : vector<16x1xf32> to vector<16x128xf32>
    %18 = arith.mulf %8, %17 : vector<16x128xf32>
    %19 = vector.broadcast %1 : vector<1x128xf32> to vector<16x128xf32>
    %20 = arith.mulf %18, %19 : vector<16x128xf32>
    %21 = vector.broadcast %2 : vector<1x128xf32> to vector<16x128xf32>
    %22 = arith.addf %20, %21 : vector<16x128xf32>
    %23 = arith.truncf %22 : vector<16x128xf32> to vector<16x128xbf16>
    %c0_9 = arith.constant 0 : index
    %c0_10 = arith.constant 0 : index
    %24 = vector.load %arg4[%c0_9, %c0_10] : memref<128x384xbf16, #tpu.memory_space<vmem>>, vector<128x384xbf16>
    %cst_11 = arith.constant dense<0.000000e+00> : vector<16x384xf32>
    %25 = tpu.matmul %23, %24, %cst_11 {dimension_numbers = #tpu.dot_dimension_numbers<[1], [0], [0], [1], [0, 0, 1, 1], [], []>} : vector<16x128xbf16>, vector<128x384xbf16>, vector<16x384xf32> -> vector<16x384xf32>
    %c0_12 = arith.constant 0 : index
    %c0_13 = arith.constant 0 : index
    %26 = vector.load %arg5[%c0_12, %c0_13] : memref<1x384xf32, #tpu.memory_space<vmem>>, vector<1x384xf32>
    %27 = vector.broadcast %26 : vector<1x384xf32> to vector<16x384xf32>
    %28 = arith.addf %25, %27 : vector<16x384xf32>
    %29 = arith.truncf %28 : vector<16x384xf32> to vector<16x384xbf16>
    %c0_14 = arith.constant 0 : index
    %c0_15 = arith.constant 0 : index
    %30 = vector.load %arg6[%c0_14, %c0_15] : memref<16x384xbf16, #tpu.memory_space<vmem>>, vector<16x384xbf16>
    tpu.vector_store %arg6[%c0_14, %c0_15], %29 {strides = array<i32>} : memref<16x384xbf16, #tpu.memory_space<vmem>>, vector<16x384xbf16>,
    return
  }
  func.func @transform_0(%arg0: i32) -> (i32, i32) {
    %c0_i32 = arith.constant 0 : i32
    %c0_i32_0 = arith.constant 0 : i32
    return %arg0, %c0_i32 : i32, i32
  }
  func.func @transform_1(%arg0: i32) -> (i32, i32) {
    %c0_i32 = arith.constant 0 : i32
    %c0_i32_0 = arith.constant 0 : i32
    %c0_i32_1 = arith.constant 0 : i32
    return %c0_i32, %c0_i32_0 : i32, i32
  }
  func.func @transform_2(%arg0: i32) -> (i32, i32) {
    %c0_i32 = arith.constant 0 : i32
    %c0_i32_0 = arith.constant 0 : i32
    %c0_i32_1 = arith.constant 0 : i32
    return %c0_i32, %c0_i32_0 : i32, i32
  }
  func.func @transform_3(%arg0: i32) -> (i32, i32) {
    %c0_i32 = arith.constant 0 : i32
    %c0_i32_0 = arith.constant 0 : i32
    %c0_i32_1 = arith.constant 0 : i32
    return %c0_i32, %c0_i32_0 : i32, i32
  }
  func.func @transform_4(%arg0: i32) -> (i32, i32) {
    %c0_i32 = arith.constant 0 : i32
    %c0_i32_0 = arith.constant 0 : i32
    %c0_i32_1 = arith.constant 0 : i32
    return %c0_i32, %c0_i32_0 : i32, i32
  }
  func.func @transform_5(%arg0: i32) -> (i32, i32) {
    %c0_i32 = arith.constant 0 : i32
    %c0_i32_0 = arith.constant 0 : i32
    return %arg0, %c0_i32 : i32, i32
  }
}

</mosaic_0001>

<llo_original>
// kernel: tpu_custom_call.1
$region0: #{tpu_custom_call.1}
  #allocation0 [shape = 'u32[]', space=smem, size = 0x4, offset = 0x4, fixed_abs, tag = 'smem constant byte address 0x4 - core index']
  #allocation1 [shape = 'u32[144,128]{1,0:T(1,128)}', space=vmem, size = 0x12000, scoped, tag = 'internal scratch']
  %s0 = inlined_call_operand.hbm [shape: f32[32,128], index: 0, kind: input, shape index: {}]
  %s1 = inlined_call_operand.vmem [shape: f32[1,128], index: 1, kind: input, shape index: {}]
  %s2 = inlined_call_operand.vmem [shape: f32[1,128], index: 2, kind: input, shape index: {}]
  %s3 = inlined_call_operand.hbm [shape: bf16[128,384], index: 3, kind: input, shape index: {}]
  %s4 = inlined_call_operand.vmem [shape: f32[1,384], index: 4, kind: input, shape index: {}]
  %s5 = inlined_call_operand.hbm [shape: bf16[32,384], index: 5, kind: output, shape index: {}]
  %s6 = sld [smem:[#allocation0]]
  $region61: #{tpu_custom_call.1} parent=0
    _
  %s8 = ssub.s32 1, %s6
  %s9 = scalar_select 0, %s8, %s6
  $region1: #{tpu_custom_call.1} parent=0
    #allocation2 [shape = 'u8[16384]{0}', space=vmem, size = 0x4000, scoped, tag = 'input window, operand 0']
    #allocation3 [shape = 's32[2]{0}', space=sflag, size = 0x8, scoped, tag = 'scoped memory for tpu_custom_call.1']
    #allocation4 [shape = 's32[2]{0}', space=sflag, size = 0x8, scoped, tag = 'scoped memory for tpu_custom_call.1']
    #allocation5 [shape = 'u8[98304]{0}', space=vmem, size = 0x18000, scoped, tag = 'input window, operand 3, single buffered']
    #allocation6 [shape = 's32[1]{0}', space=sflag, size = 0x4, scoped, tag = 'scoped memory for tpu_custom_call.1']
    #allocation7 [shape = 'u8[24576]{0}', space=vmem, size = 0x6000, scoped, tag = 'output window, operand 0']
    %10 = vsyncpa [#allocation3], 0
    %s11 = scalar_lea.sflag [#allocation3], 1
    %12 = vsyncpa %s11, 0
    %13 = vsyncpa [#allocation6], 0
    %14 = vsyncpa [#allocation4], 0
    %s15 = scalar_lea.sflag [#allocation4], 1
    %16 = vsyncpa %s15, 0
    loop: start=0, step=1, limit=4
    $region2: #{tpu_custom_call.1} parent=1 // loop_pre_header
      _
    $region3: #{tpu_custom_call.1} parent=1 // loop_header
      %s18 = sphi 0, %s22
      %p19 = scmp.ge.s32.totalorder %s18, 4
      %s28 = sphi 0, %s30
      %s31 = sphi 0, %s28
      %s32 = sphi 0, %s31
      %s48 = sphi 0, %s32
      %s52 = sphi 0, %s52
      %s54 = sphi 0, %s52
      %s55 = sphi 0, %s54
      %s69 = sphi 0, %s55
      %s73 = sphi 0, %s73
      %s75 = sphi 0, %s73
      %s76 = sphi 0, %s75
      %s90 = sphi 0, %s76
      %s94 = sphi 0, %s94
      %s96 = sphi 0, %s94
      %s97 = sphi 0, %s96
      %s111 = sphi 0, %s97
      %s115 = sphi 0, %s115
      %s117 = sphi 0, %s115
      %s118 = sphi 0, %s117
      %s132 = sphi 0, %s118
      %s138 = sphi 0, %s140
      %s141 = sphi 0, %s138
      %s142 = sphi 0, %s141
      %s158 = sphi 0, %s142
    $region4: #{tpu_custom_call.1} parent=1 // loop_header_branch
      %21 = sbr.rel (%p19) target = $region8
    $region5: #{tpu_custom_call.1} parent=1 // loop_body
      %s23 = ssub.s32 %s18, 1
      %s24 = ssub.s32 %s18, 2
      %s25 = sadd.s32 %s18, 1
      %s26 = ssub.s32 %s18, %s25
      %p27 = scmp.eq.s32.totalorder %s26, 0
      %s29 = sadd.s32 %s28, 1
      %s30 = scalar_select %p27, %s28, %s29
      %p33 = pneg %p27
      %p34 = scmp.eq.s32.totalorder %s18, 1
      %p35 = por %p33, %p34
      %p36 = scmp.ne.s32.totalorder %s28, %s31
      %p37 = scmp.eq.s32.totalorder %s18, 0
      %p38 = por %p36, %p37
      %p39 = scmp.ne.s32.totalorder %s28, %s31
      %p40 = scmp.eq.s32.totalorder %s23, 1
      %p41 = por %p39, %p40
      %p42 = scmp.ne.s32.totalorder %s31, %s32
      %p43 = scmp.eq.s32.totalorder %s23, 0
      %p44 = por %p42, %p43
      %p45 = scmp.ne.s32.totalorder %s31, %s32
      %p46 = scmp.eq.s32.totalorder %s24, 1
      %p47 = por %p45, %p46
      %p49 = scmp.ne.s32.totalorder %s32, %s48
      %p50 = scmp.eq.s32.totalorder %s24, 0
      %p51 = por %p49, %p50
      %s53 = sadd.s32 %s52, 1
      %p56 = scmp.eq.s32.totalorder %s18, 1
      %p57 = scmp.ne.s32.totalorder %s52, %s54
      %p58 = scmp.eq.s32.totalorder %s18, 0
      %p59 = por %p57, %p58
      %p60 = scmp.ne.s32.totalorder %s52, %s54
      %p61 = scmp.eq.s32.totalorder %s23, 1
      %p62 = por %p60, %p61
      %p63 = scmp.ne.s32.totalorder %s54, %s55
      %p64 = scmp.eq.s32.totalorder %s23, 0
      %p65 = por %p63, %p64
      %p66 = scmp.ne.s32.totalorder %s54, %s55
      %p67 = scmp.eq.s32.totalorder %s24, 1
      %p68 = por %p66, %p67
      %p70 = scmp.ne.s32.totalorder %s55, %s69
      %p71 = scmp.eq.s32.totalorder %s24, 0
      %p72 = por %p70, %p71
      %s74 = sadd.s32 %s73, 1
      %p77 = scmp.eq.s32.totalorder %s18, 1
      %p78 = scmp.ne.s32.totalorder %s73, %s75
      %p79 = scmp.eq.s32.totalorder %s18, 0
      %p80 = por %p78, %p79
      %p81 = scmp.ne.s32.totalorder %s73, %s75
      %p82 = scmp.eq.s32.totalorder %s23, 1
      %p83 = por %p81, %p82
      %p84 = scmp.ne.s32.totalorder %s75, %s76
      %p85 = scmp.eq.s32.totalorder %s23, 0
      %p86 = por %p84, %p85
      %p87 = scmp.ne.s32.totalorder %s75, %s76
      %p88 = scmp.eq.s32.totalorder %s24, 1
      %p89 = por %p87, %p88
      %p91 = scmp.ne.s32.totalorder %s76, %s90
      %p92 = scmp.eq.s32.totalorder %s24, 0
      %p93 = por %p91, %p92
      %s95 = sadd.s32 %s94, 1
      %p98 = scmp.eq.s32.totalorder %s18, 1
      %p99 = scmp.ne.s32.totalorder %s94, %s96
      %p100 = scmp.eq.s32.totalorder %s18, 0
      %p101 = por %p99, %p100
      %p102 = scmp.ne.s32.totalorder %s94, %s96
      %p103 = scmp.eq.s32.totalorder %s23, 1
      %p104 = por %p102, %p103
      %p105 = scmp.ne.s32.totalorder %s96, %s97
      %p106 = scmp.eq.s32.totalorder %s23, 0
      %p107 = por %p105, %p106
      %p108 = scmp.ne.s32.totalorder %s96, %s97
      %p109 = scmp.eq.s32.totalorder %s24, 1
      %p110 = por %p108, %p109
      %p112 = scmp.ne.s32.totalorder %s97, %s111
      %p113 = scmp.eq.s32.totalorder %s24, 0
      %p114 = por %p112, %p113
      %s116 = sadd.s32 %s115, 1
      %p119 = scmp.eq.s32.totalorder %s18, 1
      %p120 = scmp.ne.s32.totalorder %s115, %s117
      %p121 = scmp.eq.s32.totalorder %s18, 0
      %p122 = por %p120, %p121
      %p123 = scmp.ne.s32.totalorder %s115, %s117
      %p124 = scmp.eq.s32.totalorder %s23, 1
      %p125 = por %p123, %p124
      %p126 = scmp.ne.s32.totalorder %s117, %s118
      %p127 = scmp.eq.s32.totalorder %s23, 0
      %p128 = por %p126, %p127
      %p129 = scmp.ne.s32.totalorder %s117, %s118
      %p130 = scmp.eq.s32.totalorder %s24, 1
      %p131 = por %p129, %p130
      %p133 = scmp.ne.s32.totalorder %s118, %s132
      %p134 = scmp.eq.s32.totalorder %s24, 0
      %p135 = por %p133, %p134
      %s136 = ssub.s32 %s18, %s25
      %p137 = scmp.eq.s32.totalorder %s136, 0
      %s139 = sadd.s32 %s138, 1
      %s140 = scalar_select %p137, %s138, %s139
      %p143 = pneg %p137
      %p144 = scmp.eq.s32.totalorder %s18, 1
      %p145 = por %p143, %p144
      %p146 = scmp.ne.s32.totalorder %s138, %s141
      %p147 = scmp.eq.s32.totalorder %s18, 0
      %p148 = por %p146, %p147
      %p149 = scmp.ne.s32.totalorder %s138, %s141
      %p150 = scmp.eq.s32.totalorder %s23, 1
      %p151 = por %p149, %p150
      %p152 = scmp.ne.s32.totalorder %s141, %s142
      %p153 = scmp.eq.s32.totalorder %s23, 0
      %p154 = por %p152, %p153
      %p155 = scmp.ne.s32.totalorder %s141, %s142
      %p156 = scmp.eq.s32.totalorder %s24, 1
      %p157 = por %p155, %p156
      %p159 = scmp.ne.s32.totalorder %s142, %s158
      %p160 = scmp.eq.s32.totalorder %s24, 0
      %p161 = por %p159, %p160
      %p162 = scmp.le.s32.totalorder 1, %s18
      %p163 = scmp.lt.s32.totalorder %s18, 3
      %p164 = pnand %p162, %p163
      %p165 = pneg %p164
      // Predicated region
      $region9: #{tpu_custom_call.1} parent=5 // pred_check
        _
      $region10: #{tpu_custom_call.1} parent=5 // pred_check_branch
        %167 = sbr.rel (%p164) target = $region12
      $region11: #{tpu_custom_call.1} parent=5 // pred_region
        %s168 = ssub.s32 %s18, 1
        // Predicated region
        $region13: #{tpu_custom_call.1} parent=11 // pred_check
          %p169 = pneg %p65
        $region14: #{tpu_custom_call.1} parent=11 // pred_check_branch
          %171 = sbr.rel (%p169) target = $region16
        $region15: #{tpu_custom_call.1} parent=11 // pred_region
          _
        $region16: #{tpu_custom_call.1} parent=11 // pred_fallthru
          _
        // Predicated region
        $region17: #{tpu_custom_call.1} parent=11 // pred_check
          %p172 = pneg %p86
        $region18: #{tpu_custom_call.1} parent=11 // pred_check_branch
          %174 = sbr.rel (%p172) target = $region20
        $region19: #{tpu_custom_call.1} parent=11 // pred_region
          _
        $region20: #{tpu_custom_call.1} parent=11 // pred_fallthru
          _
        // Predicated region
        $region21: #{tpu_custom_call.1} parent=11 // pred_check
          %p175 = pneg %p107
        $region22: #{tpu_custom_call.1} parent=11 // pred_check_branch
          %177 = sbr.rel (%p175) target = $region24
        $region23: #{tpu_custom_call.1} parent=11 // pred_region
          %s179 = ssub.s32 3072, 3072
          %180 = vsyncadd [#allocation6], %s179
          %s181 = sshll.u32 [#allocation5], 4
          %s182 = int_to_ptr.vmem [resolvable:$true] %s181
          %187 = dma.hbm_to_vmem [thread:$0]  %s3, 3072, %s182, [#allocation6], 192, 192, 12
        $region24: #{tpu_custom_call.1} parent=11 // pred_fallthru
          _
        // Predicated region
        $region25: #{tpu_custom_call.1} parent=11 // pred_check
          %p188 = pneg %p128
        $region26: #{tpu_custom_call.1} parent=11 // pred_check_branch
          %190 = sbr.rel (%p188) target = $region28
        $region27: #{tpu_custom_call.1} parent=11 // pred_region
          _
        $region28: #{tpu_custom_call.1} parent=11 // pred_fallthru
          _
      $region12: #{tpu_custom_call.1} parent=5 // pred_fallthru
        _
      %p191 = scmp.lt.s32.totalorder %s18, 2
      // Predicated region
      $region29: #{tpu_custom_call.1} parent=5 // pred_check
        %p192 = pneg %p191
      $region30: #{tpu_custom_call.1} parent=5 // pred_check_branch
        %194 = sbr.rel (%p192) target = $region32
      $region31: #{tpu_custom_call.1} parent=5 // pred_region
        // Predicated region
        $region33: #{tpu_custom_call.1} parent=31 // pred_check
          %p195 = pneg %p38
        $region34: #{tpu_custom_call.1} parent=31 // pred_check_branch
          %197 = sbr.rel (%p195) target = $region36
        $region35: #{tpu_custom_call.1} parent=31 // pred_region
          %s198 = sand.u32 %s28, 1
          %s199 = scalar_lea.sflag [#allocation3], %s198
          %s200 = sand.u32 %s28, 1
          %s201 = smul.addr %s200, 16
          %s202 = scalar_lea.vmem [#allocation2], %s201
          %s203 = smul.u32 2, %s18
          %s205 = ssub.s32 256, 256
          %206 = vsyncadd %s199, %s205
          %s207 = smul.addr %s203, 128
          %s208 = scalar_lea.hbm %s0, %s207
          %s209 = sshll.u32 %s202, 4
          %s210 = int_to_ptr.vmem [resolvable:$true] %s209
          %215 = dma.hbm_to_vmem [thread:$0]  %s208, 256, %s210, %s199, 128, 128, 8
        $region36: #{tpu_custom_call.1} parent=31 // pred_fallthru
          _
      $region32: #{tpu_custom_call.1} parent=5 // pred_fallthru
        _
      %p216 = scmp.le.s32.totalorder 1, %s18
      %p217 = scmp.lt.s32.totalorder %s18, 3
      %p218 = pnand %p216, %p217
      %p219 = pneg %p218
      // Predicated region
      $region37: #{tpu_custom_call.1} parent=5 // pred_check
        _
      $region38: #{tpu_custom_call.1} parent=5 // pred_check_branch
        %221 = sbr.rel (%p218) target = $region40
      $region39: #{tpu_custom_call.1} parent=5 // pred_region
        %s222 = ssub.s32 %s18, 1
        %s223 = sand.u32 %s31, 1
        %s224 = scalar_lea.sflag [#allocation3], %s223
        %s225 = sand.u32 %s31, 1
        %s226 = smul.addr %s225, 16
        %s227 = scalar_lea.vmem [#allocation2], %s226
        // Predicated region
        $region41: #{tpu_custom_call.1} parent=39 // pred_check
          %p228 = pneg %p44
        $region42: #{tpu_custom_call.1} parent=39 // pred_check_branch
          %230 = sbr.rel (%p228) target = $region44
        $region43: #{tpu_custom_call.1} parent=39 // pred_region
          %231 = dma.done %s224, 256
        $region44: #{tpu_custom_call.1} parent=39 // pred_fallthru
          _
        // Predicated region
        $region45: #{tpu_custom_call.1} parent=39 // pred_check
          %p232 = pneg %p107
        $region46: #{tpu_custom_call.1} parent=39 // pred_check_branch
          %234 = sbr.rel (%p232) target = $region48
        $region47: #{tpu_custom_call.1} parent=39 // pred_region
          %235 = dma.done [#allocation6], 3072
        $region48: #{tpu_custom_call.1} parent=39 // pred_fallthru
          _
        %s236 = sand.u32 %s31, 1
        %s237 = scalar_lea.sflag [#allocation3], %s236
        %s238 = sand.u32 %s31, 1
        %s239 = smul.addr %s238, 16
        %s240 = scalar_lea.vmem [#allocation2], %s239
        %p241 = pneg %p44
        %p242 = pneg %p41
        %p243 = pneg %p65
        %p244 = pneg %p62
        %p245 = pneg %p86
        %p246 = pneg %p83
        %p247 = pneg %p107
        %p248 = pneg %p104
        %p249 = pneg %p128
        %p250 = pneg %p125
        %p251 = pneg %p154
        %p252 = pneg %p151
        %s253 = sand.u32 %s141, 1
        %s254 = scalar_lea.sflag [#allocation4], %s253
        %s255 = sand.u32 %s141, 1
        %s256 = smul.addr %s255, 24
        %s257 = scalar_lea.vmem [#allocation7], %s256
        %s258 = smul.u32 2, %s23
        %s259 = smul.u32 2, %s23
        %v261 = vld [vmem:[%s227] sm:$0xff]
        %v262 = vld [vmem:[%s227 + $0x8] sm:$0xff]
        %v263 = vld [vmem:[%s1] sm:$0x1]
        %v264 = vld [vmem:[%s2] sm:$0x1]
        %265 = vadd.xlane.f32.xlu0 %v261
        %v266 = vpop.xlane.xlu0 %265
        %267 = vadd.xlane.f32.xlu0 %v262
        %v268 = vpop.xlane.xlu0 %267
        %v269 = vrcp.pop 128.0
        %v270 = vmul.f32 %v266, %v269
        %v271 = vmul.f32 %v268, %v269
        %v272 = vsub.f32 %v261, %v270
        %v273 = vsub.f32 %v262, %v271
        %v274 = vmul.f32 %v272, %v272
        %v275 = vmul.f32 %v273, %v273
        %276 = vadd.xlane.f32.xlu0 %v274
        %v277 = vpop.xlane.xlu0 %276
        %278 = vadd.xlane.f32.xlu0 %v275
        %v279 = vpop.xlane.xlu0 %278
        %v280 = vmul.f32 %v277, %v269
        %v281 = vmul.f32 %v279, %v269
        %v282 = vadd.f32 %v280, 1e-05
        %v283 = vadd.f32 %v281, 1e-05
        %v284 = vrsqrt.pop %v282
        %v285 = vrsqrt.pop %v283
        %v286 = vmul.f32 %v272, %v284
        %v287 = vmul.f32 %v273, %v285
        %v289 = vlaneseq
        %v290 = vshrl.u32 %v289, 7
        %v291 = vsub.s32 0, %v290
        %v292 = vrot.slane %v263, %v291
        %v294 = vmul.f32 %v286, %v292
        %v295 = vmul.f32 %v287, %v292
        %v297 = vlaneseq
        %v298 = vshrl.u32 %v297, 7
        %v299 = vsub.s32 0, %v298
        %v300 = vrot.slane %v264, %v299
        %v302 = vadd.f32 %v294, %v300
        %v303 = vadd.f32 %v295, %v300
        %v304 = vpack.c.bf16 %v303, %v302
        %v305 = vld [vmem:[#allocation5] sm:$0xff]
        %v306 = vld [vmem:[#allocation5 + $0x8] sm:$0xf]
        %v307 = vld [vmem:[#allocation5 + $0xc] sm:$0xff]
        %v308 = vld [vmem:[#allocation5 + $0x14] sm:$0xf]
        %v309 = vld [vmem:[#allocation5 + $0x18] sm:$0xff]
        %v310 = vld [vmem:[#allocation5 + $0x20] sm:$0xf]
        %v311 = vld [vmem:[#allocation5 + $0x24] sm:$0xff]
        %v312 = vld [vmem:[#allocation5 + $0x2c] sm:$0xf]
        %v313 = vld [vmem:[#allocation5 + $0x30] sm:$0xff]
        %v314 = vld [vmem:[#allocation5 + $0x38] sm:$0xf]
        %v315 = vld [vmem:[#allocation5 + $0x3c] sm:$0xff]
        %v316 = vld [vmem:[#allocation5 + $0x44] sm:$0xf]
        %v317 = vld [vmem:[#allocation5 + $0x48] sm:$0xff]
        %v318 = vld [vmem:[#allocation5 + $0x50] sm:$0xf]
        %v319 = vld [vmem:[#allocation5 + $0x54] sm:$0xff]
        %v320 = vld [vmem:[#allocation5 + $0x5c] sm:$0xf]
        %v321 = vld [vmem:[#allocation5 + $0x60] sm:$0xff]
        %v322 = vld [vmem:[#allocation5 + $0x68] sm:$0xf]
        %v323 = vld [vmem:[#allocation5 + $0x6c] sm:$0xff]
        %v324 = vld [vmem:[#allocation5 + $0x74] sm:$0xf]
        %v325 = vld [vmem:[#allocation5 + $0x78] sm:$0xff]
        %v326 = vld [vmem:[#allocation5 + $0x80] sm:$0xf]
        %v327 = vld [vmem:[#allocation5 + $0x84] sm:$0xff]
        %v328 = vld [vmem:[#allocation5 + $0x8c] sm:$0xf]
        %v329 = vld [vmem:[#allocation5 + $0x90] sm:$0xff]
        %v330 = vld [vmem:[#allocation5 + $0x98] sm:$0xf]
        %v331 = vld [vmem:[#allocation5 + $0x9c] sm:$0xff]
        %v332 = vld [vmem:[#allocation5 + $0xa4] sm:$0xf]
        %v333 = vld [vmem:[#allocation5 + $0xa8] sm:$0xff]
        %v334 = vld [vmem:[#allocation5 + $0xb0] sm:$0xf]
        %v335 = vld [vmem:[#allocation5 + $0xb4] sm:$0xff]
        %v336 = vld [vmem:[#allocation5 + $0xbc] sm:$0xf]
        %v337 = vld [vmem:[%s4] sm:$0x7]
        %v339 = vlaneseq
        %v340 = vshrl.u32 %v339, 7
        %v341 = vsub.s32 0, %v340
        %v342 = vrot.slane %v337, %v341
        %v343 = vlaneseq
        %v344 = vshrl.u32 %v343, 7
        %v345 = vsub.s32 1, %v344
        %v346 = vrot.slane %v337, %v345
        %v347 = vlaneseq
        %v348 = vshrl.u32 %v347, 7
        %v349 = vsub.s32 2, %v348
        %v350 = vrot.slane %v337, %v349
        %v386 = vunpack.c.l.b16 %v305
        %v387 = vunpack.c.h.b16 %v305
        %v388 = vunpack.c.l.b16 %v306
        %v389 = vunpack.c.l.b16 %v307
        %v390 = vunpack.c.h.b16 %v307
        %v391 = vunpack.c.l.b16 %v308
        %v392 = vunpack.c.l.b16 %v309
        %v393 = vunpack.c.h.b16 %v309
        %v394 = vunpack.c.l.b16 %v310
        %v395 = vunpack.c.l.b16 %v311
        %v396 = vunpack.c.h.b16 %v311
        %v397 = vunpack.c.l.b16 %v312
        %v398 = vunpack.c.l.b16 %v313
        %v399 = vunpack.c.h.b16 %v313
        %v400 = vunpack.c.l.b16 %v314
        %v401 = vunpack.c.l.b16 %v315
        %v402 = vunpack.c.h.b16 %v315
        %v403 = vunpack.c.l.b16 %v316
        %v404 = vunpack.c.l.b16 %v317
        %v405 = vunpack.c.h.b16 %v317
        %v406 = vunpack.c.l.b16 %v318
        %v407 = vunpack.c.l.b16 %v319
        %v408 = vunpack.c.h.b16 %v319
        %v409 = vunpack.c.l.b16 %v320
        %v410 = vunpack.c.l.b16 %v321
        %v411 = vunpack.c.h.b16 %v321
        %v412 = vunpack.c.l.b16 %v322
        %v413 = vunpack.c.l.b16 %v323
        %v414 = vunpack.c.h.b16 %v323
        %v415 = vunpack.c.l.b16 %v324
        %v416 = vunpack.c.l.b16 %v325
        %v417 = vunpack.c.h.b16 %v325
        %v418 = vunpack.c.l.b16 %v326
        %v419 = vunpack.c.l.b16 %v327
        %v420 = vunpack.c.h.b16 %v327
        %v421 = vunpack.c.l.b16 %v328
        %v422 = vunpack.c.l.b16 %v329
        %v423 = vunpack.c.h.b16 %v329
        %v424 = vunpack.c.l.b16 %v330
        %v425 = vunpack.c.l.b16 %v331
        %v426 = vunpack.c.h.b16 %v331
        %v427 = vunpack.c.l.b16 %v332
        %v428 = vunpack.c.l.b16 %v333
        %v429 = vunpack.c.h.b16 %v333
        %v430 = vunpack.c.l.b16 %v334
        %v431 = vunpack.c.l.b16 %v335
        %v432 = vunpack.c.h.b16 %v335
        %v433 = vunpack.c.l.b16 %v336
        %v434 = vpack.c.b16 %v389, %v386
        %v435 = vpack.c.b16 %v390, %v387
        %v436 = vpack.c.b16 %v391, %v388
        %v437 = vpack.c.b16 %v395, %v392
        %v438 = vpack.c.b16 %v396, %v393
        %v439 = vpack.c.b16 %v397, %v394
        %v440 = vpack.c.b16 %v401, %v398
        %v441 = vpack.c.b16 %v402, %v399
        %v442 = vpack.c.b16 %v403, %v400
        %v443 = vpack.c.b16 %v407, %v404
        %v444 = vpack.c.b16 %v408, %v405
        %v445 = vpack.c.b16 %v409, %v406
        %v446 = vpack.c.b16 %v413, %v410
        %v447 = vpack.c.b16 %v414, %v411
        %v448 = vpack.c.b16 %v415, %v412
        %v449 = vpack.c.b16 %v419, %v416
        %v450 = vpack.c.b16 %v420, %v417
        %v451 = vpack.c.b16 %v421, %v418
        %v452 = vpack.c.b16 %v425, %v422
        %v453 = vpack.c.b16 %v426, %v423
        %v454 = vpack.c.b16 %v427, %v424
        %v455 = vpack.c.b16 %v431, %v428
        %v456 = vpack.c.b16 %v432, %v429
        %v457 = vpack.c.b16 %v433, %v430
        %482 = vmatprep.subr.bf16.mxu0 %v435
        %483 = vmatpush1.bf16.msra.mxu0 %v434
        %484 = vmatprep.subr.bf16.mxu0 %v438
        %485 = vmatpush1.bf16.msra.mxu0 %v437
        %486 = vmatprep.subr.bf16.mxu0 %v441
        %487 = vmatpush1.bf16.msra.mxu0 %v440
        %488 = vmatprep.subr.bf16.mxu0 %v444
        %489 = vmatpush1.bf16.msra.mxu0 %v443
        %490 = vmatprep.subr.bf16.mxu0 %v447
        %491 = vmatpush1.bf16.msra.mxu0 %v446
        %492 = vmatprep.subr.bf16.mxu0 %v450
        %493 = vmatpush1.bf16.msra.mxu0 %v449
        %494 = vmatprep.subr.bf16.mxu0 %v453
        %495 = vmatpush1.bf16.msra.mxu0 %v452
        %496 = vmatprep.subr.bf16.mxu0 %v456
        %497 = vmatpush1.bf16.msra.mxu0 %v455
        %498 = vmatprep.subr.bf16.mxu0 0
        %499 = vmatpush1.bf16.msra.mxu0 0
        %500 = vmatprep.subr.bf16.mxu0 0
        %501 = vmatpush1.bf16.msra.mxu0 0
        %502 = vmatprep.subr.bf16.mxu0 0
        %503 = vmatpush1.bf16.msra.mxu0 0
        %504 = vmatprep.subr.bf16.mxu0 0
        %505 = vmatpush1.bf16.msra.mxu0 0
        %506 = vmatprep.subr.bf16.mxu0 0
        %507 = vmatpush1.bf16.msra.mxu0 0
        %508 = vmatprep.subr.bf16.mxu0 0
        %509 = vmatpush1.bf16.msra.mxu0 0
        %510 = vmatprep.subr.bf16.mxu0 0
        %511 = vmatpush1.bf16.msra.mxu0 0
        %512 = vmatprep.subr.bf16.mxu0 0
        %513 = vmatpush1.bf16.msra.mxu0 0
        %514 = vmatprep.mubr.bf16.mxu0 0
        %515 = vmatmul.mubr.bf16.gmra.mrb[0].mxu0 %v304
        %v516 = vpop.f32.mrb[0].mxu0
        %v517 = vadd.f32 %v342, %v516
        %v518 = vpop.f32.mrb[0].mxu0
        %v519 = vadd.f32 %v346, %v518
        %v520 = vpop.f32.mrb[0].mxu0
        %v521 = vadd.f32 %v342, %v520
        %v522 = vpop.f32.mrb[0].mxu0
        %v523 = vadd.f32 %v346, %v522
        %524 = vdwg.mxu0
        %525 = vmatprep.subr.bf16.mxu0 0
        %526 = vmatpush1.bf16.msra.mxu0 %v436
        %527 = vmatprep.subr.bf16.mxu0 0
        %528 = vmatpush1.bf16.msra.mxu0 %v439
        %529 = vmatprep.subr.bf16.mxu0 0
        %530 = vmatpush1.bf16.msra.mxu0 %v442
        %531 = vmatprep.subr.bf16.mxu0 0
        %532 = vmatpush1.bf16.msra.mxu0 %v445
        %533 = vmatprep.subr.bf16.mxu0 0
        %534 = vmatpush1.bf16.msra.mxu0 %v448
        %535 = vmatprep.subr.bf16.mxu0 0
        %536 = vmatpush1.bf16.msra.mxu0 %v451
        %537 = vmatprep.subr.bf16.mxu0 0
        %538 = vmatpush1.bf16.msra.mxu0 %v454
        %539 = vmatprep.subr.bf16.mxu0 0
        %540 = vmatpush1.bf16.msra.mxu0 %v457
        %541 = vmatprep.subr.bf16.mxu0 0
        %542 = vmatpush1.bf16.msra.mxu0 0
        %543 = vmatprep.subr.bf16.mxu0 0
        %544 = vmatpush1.bf16.msra.mxu0 0
        %545 = vmatprep.subr.bf16.mxu0 0
        %546 = vmatpush1.bf16.msra.mxu0 0
        %547 = vmatprep.subr.bf16.mxu0 0
        %548 = vmatpush1.bf16.msra.mxu0 0
        %549 = vmatprep.subr.bf16.mxu0 0
        %550 = vmatpush1.bf16.msra.mxu0 0
        %551 = vmatprep.subr.bf16.mxu0 0
        %552 = vmatpush1.bf16.msra.mxu0 0
        %553 = vmatprep.subr.bf16.mxu0 0
        %554 = vmatpush1.bf16.msra.mxu0 0
        %555 = vmatprep.subr.bf16.mxu0 0
        %556 = vmatpush1.bf16.msra.mxu0 0
        %557 = vmatprep.mubr.bf16.mxu0 0
        %558 = vmatmul.mubr.bf16.gmra.mrb[0].mxu0 %v304
        %v559 = vpop.f32.mrb[0].mxu0
        %v560 = vadd.f32 %v350, %v559
        %v561 = vpop.f32.mrb[0].mxu0
        %v562 = vpop.f32.mrb[0].mxu0
        %v563 = vadd.f32 %v350, %v562
        %v564 = vpop.f32.mrb[0].mxu0
        %565 = vdwg.mxu0
        %v566 = vpack.c.bf16 %v521, %v517
        %v567 = vpack.c.bf16 %v523, %v519
        %v568 = vpack.c.bf16 %v563, %v560
        %v572 = vunpack.c.l.b16 %v566
        %v573 = vunpack.c.l.b16 %v567
        %v574 = vunpack.c.l.b16 %v568
        %v575 = vunpack.c.h.b16 %v566
        %v576 = vunpack.c.h.b16 %v567
        %v577 = vunpack.c.h.b16 %v568
        %v578 = vpack.c.b16 %v573, %v572
        %v579 = vpack.c.b16 %v574, %v574
        %v580 = vpack.c.b16 %v576, %v575
        %v581 = vpack.c.b16 %v577, %v577
        %586 = vst [vmem:[%s257] sm:$0xff] %v578
        %587 = vst [vmem:[%s257 + $0x8] sm:$0xf] %v579
        %588 = vst [vmem:[%s257 + $0xc] sm:$0xff] %v580
        %589 = vst [vmem:[%s257 + $0x14] sm:$0xf] %v581
        %s590 = sand.u32 %s141, 1
        %s591 = scalar_lea.sflag [#allocation4], %s590
        %s592 = sand.u32 %s141, 1
        %s593 = smul.addr %s592, 24
        %s594 = scalar_lea.vmem [#allocation7], %s593
        // Predicated region
        $region49: #{tpu_custom_call.1} parent=39 // pred_check
          %p595 = pneg %p151
        $region50: #{tpu_custom_call.1} parent=39 // pred_check_branch
          %597 = sbr.rel (%p595) target = $region52
        $region51: #{tpu_custom_call.1} parent=39 // pred_region
          %s598 = smul.u32 2, %s23
          %s600 = ssub.s32 384, 384
          %601 = vsyncadd %s591, %s600
          %s602 = smul.addr %s598, 3
          %s603 = smul.addr %s602, 64
          %s604 = scalar_lea.hbm %s5, %s603
          %s605 = sshll.u32 %s594, 4
          %s606 = int_to_ptr.vmem [resolvable:$true] %s605
          %611 = dma.vmem_to_hbm [thread:$0]  %s606, 384, %s604, %s591, 192, 192, 12
        $region52: #{tpu_custom_call.1} parent=39 // pred_fallthru
          _
      $region40: #{tpu_custom_call.1} parent=5 // pred_fallthru
        _
      %p612 = scmp.le.s32.totalorder 2, %s18
      // Predicated region
      $region53: #{tpu_custom_call.1} parent=5 // pred_check
        %p613 = pneg %p612
      $region54: #{tpu_custom_call.1} parent=5 // pred_check_branch
        %615 = sbr.rel (%p613) target = $region56
      $region55: #{tpu_custom_call.1} parent=5 // pred_region
        %s616 = ssub.s32 %s18, 2
        // Predicated region
        $region57: #{tpu_custom_call.1} parent=55 // pred_check
          %p617 = pneg %p157
        $region58: #{tpu_custom_call.1} parent=55 // pred_check_branch
          %619 = sbr.rel (%p617) target = $region60
        $region59: #{tpu_custom_call.1} parent=55 // pred_region
          %s620 = sand.u32 %s142, 1
          %s621 = scalar_lea.sflag [#allocation4], %s620
          %s622 = sand.u32 %s142, 1
          %s623 = smul.addr %s622, 24
          %s624 = scalar_lea.vmem [#allocation7], %s623
          %625 = dma.done %s621, 384
        $region60: #{tpu_custom_call.1} parent=55 // pred_fallthru
          _
      $region56: #{tpu_custom_call.1} parent=5 // pred_fallthru
        _
    $region6: #{tpu_custom_call.1} parent=1 // loop_footer
      %s22 = sadd.s32 1, %s18
    $region7: #{tpu_custom_call.1} parent=1 // loop_footer_branch
      %17 = sbr.rel target = $region3
    $region8: #{tpu_custom_call.1} parent=1 // loop_exit
      _
    %626 = vsyncpa [#allocation3], 1
    %s627 = scalar_lea.sflag [#allocation3], 1
    %628 = vsyncpa %s627, 1
    %629 = vsyncpa [#allocation6], 1
    %630 = vsyncpa [#allocation4], 1
    %s631 = scalar_lea.sflag [#allocation4], 1
    %632 = vsyncpa %s631, 1

</llo_original>
